<compile_context>
chip_gen: v5e
topology: v5e:2x2
jax: 0.10.0
libtpu: 0.0.40
codegen_flags: <defaults>
</compile_context>

<pallas_src>
import functools

import jax
import jax.numpy as jnp
from jax.experimental import pallas as pl
from jax.experimental.pallas import tpu as pltpu


def _round_up(v, m):
    return ((v + m - 1) // m) * m


def _gelu_tanh(x):
    # tanh-approximate GELU using only mul/add/tanh (guaranteed Mosaic lowering).
    # TODO(synk): torch nn.GELU() default is the exact erf form; the tanh
    # approximation (max |delta| ~1e-3) is used because erf lowering is not
    # guaranteed on the Mosaic backend.
    c = 0.7978845608028654  # sqrt(2/pi)
    return 0.5 * x * (1.0 + jnp.tanh(c * (x + 0.044715 * x * x * x)))


def ffn_kernel(x_ref, w1_ref, b1_ref, w2_ref, b2_ref, o_ref):
    # x_ref: (tm, D) f32 | w1: (D, H) bf16 | b1: (1, H) f32
    # w2:   (H, D) bf16  | b2: (1, D) f32  | o:  (tm, D) f32
    x = x_ref[...]

    # Linear 1: bf16 MXU operands, f32 accumulation; bias add in f32.
    h = jnp.dot(x.astype(w1_ref.dtype), w1_ref[...],
                preferred_element_type=jnp.float32)
    h = h + b1_ref[...]

    # GELU in f32 (v5e-friendly elementwise path).
    h = _gelu_tanh(h)
    # TODO(synk): nn.Dropout(p=0.0) / eval mode is identity and omitted.

    # Linear 2.
    out = jnp.dot(h.astype(w2_ref.dtype), w2_ref[...],
                  preferred_element_type=jnp.float32)
    out = out + b2_ref[...]

    o_ref[...] = out.astype(o_ref.dtype)


def feedforward_forward(x, params, *, tm_max=512):
    """x: (B, N, D) f32. params: w1 (D,H) bf16, b1 (1,H) f32, w2 (H,D) bf16, b2 (1,D) f32."""
    B, N, D = x.shape
    H = params["w1"].shape[1]
    M = B * N
    x2 = x.reshape(M, D)

    # Row tile: as large as reasonable, multiple of 8 sublanes.
    tm = min(tm_max, _round_up(M, 8))
    Mp = _round_up(M, tm)
    if Mp != M:
        x2 = jnp.pad(x2, ((0, Mp - M), (0, 0)))
    grid = (Mp // tm,)

    w1, b1, w2, b2 = params["w1"], params["b1"], params["w2"], params["b2"]
    wbytes = w1.dtype.itemsize

    # Explicit VMEM budget: double-buffered x/out tiles, resident bf16 weights
    # (x2 for pipelining buffers), biases, the (tm, H) hidden activation,
    # plus headroom for compiler-internal scratch.  Well under v7x's 64 MiB.
    vmem_bytes = (2 * tm * D * 4          # x tile, double-buffered
                  + 2 * tm * D * 4        # out tile, double-buffered
                  + 2 * (D * H + H * D) * wbytes
                  + 2 * (H + D) * 4
                  + tm * H * 4
                  + (8 << 20))

    cost = pl.CostEstimate(
        flops=2 * Mp * D * H + 2 * Mp * H * D,
        transcendentals=Mp * H,                       # tanh in GELU
        bytes_accessed=(2 * Mp * D * 4                # x in, out
                        + (D * H + H * D) * wbytes    # weights
                        + (H + D) * 4),               # biases
    )

    out = pl.pallas_call(
        ffn_kernel,
        out_shape=jax.ShapeDtypeStruct((Mp, D), jnp.float32),
        grid_spec=pltpu.PrefetchScalarGridSpec(
            num_scalar_prefetch=0,
            grid=grid,
            in_specs=[
                pl.BlockSpec((tm, D), lambda i: (i, 0)),   # x row tile
                pl.BlockSpec((D, H), lambda i: (0, 0)),    # W1 (in, out)
                pl.BlockSpec((1, H), lambda i: (0, 0)),    # b1
                pl.BlockSpec((H, D), lambda i: (0, 0)),    # W2 (in, out)
                pl.BlockSpec((1, D), lambda i: (0, 0)),    # b2
            ],
            out_specs=pl.BlockSpec((tm, D), lambda i: (i, 0)),
        ),
        compiler_params=pltpu.CompilerParams(
            dimension_semantics=("parallel",),
            vmem_limit_bytes=int(vmem_bytes),
        ),
        cost_estimate=cost,
    )(x2, w1, b1, w2, b2)

    return out[:M].reshape(B, N, D)


def reference_forward(x, params):
    # Pure-JAX reference mirroring the PyTorch module (dropout = identity).
    w1 = params["w1"].astype(jnp.float32)
    w2 = params["w2"].astype(jnp.float32)
    h = x @ w1 + params["b1"][0]
    h = _gelu_tanh(h)
    return h @ w2 + params["b2"][0]


if __name__ == "__main__":
    # Small but lane-dense shapes (dim, hidden multiples of 128).
    B, N = 2, 8
    dim, hidden = 128, 256

    key = jax.random.PRNGKey(0)
    kx, k1, kb1, k2, kb2 = jax.random.split(key, 5)

    x = jax.random.normal(kx, (B, N, dim), dtype=jnp.float32)
    params = {
        # Linear(dim, hidden): weight stored transposed as (in, out), in bf16.
        "w1": (jax.random.normal(k1, (dim, hidden), jnp.float32) * 0.1).astype(jnp.bfloat16),
        "b1": jax.random.normal(kb1, (1, hidden), jnp.float32) * 0.1,
        # Linear(hidden, dim)
        "w2": (jax.random.normal(k2, (hidden, dim), jnp.float32) * 0.1).astype(jnp.bfloat16),
        "b2": jax.random.normal(kb2, (1, dim), jnp.float32) * 0.1,
    }

    out = jax.block_until_ready(feedforward_forward(x, params))
    ref = reference_forward(x, params)

    assert out.shape == (B, N, dim)
    # bf16 MXU operands vs f32 reference -> loosened tolerance.
    assert jnp.allclose(out, ref, atol=5e-2, rtol=5e-2), "mismatch vs reference"

    print("KERNEL_OK")
</pallas_src>

<mosaic_0001>
module attributes {stable_mosaic.version = 11 : i64} {
  func.func @ffn_kernel(%arg0: i32, %arg1: memref<16x128xf32, #tpu.memory_space<vmem>>, %arg2: memref<128x256xbf16, #tpu.memory_space<vmem>>, %arg3: memref<1x256xf32, #tpu.memory_space<vmem>>, %arg4: memref<256x128xbf16, #tpu.memory_space<vmem>>, %arg5: memref<1x128xf32, #tpu.memory_space<vmem>>, %arg6: memref<16x128xf32, #tpu.memory_space<vmem>>) attributes {dimension_semantics = [#tpu.dimension_semantics<parallel>], iteration_bounds = array<i64: 1>, scalar_prefetch = 0 : i64, scratch_operands = 0 : i64, tpu.core_type = #tpu.core_type<tc>, window_params = [{transform_indices = @transform_0, window_bounds = array<i64: 16, 128>}, {pipeline_mode = #tpu.pipeline_mode<synchronous>, transform_indices = @transform_1, window_bounds = array<i64: 128, 256>}, {pipeline_mode = #tpu.pipeline_mode<synchronous>, transform_indices = @transform_2, window_bounds = array<i64: 1, 256>}, {pipeline_mode = #tpu.pipeline_mode<synchronous>, transform_indices = @transform_3, window_bounds = array<i64: 256, 128>}, {pipeline_mode = #tpu.pipeline_mode<synchronous>, transform_indices = @transform_4, window_bounds = array<i64: 1, 128>}, {transform_indices = @transform_5, window_bounds = array<i64: 16, 128>}]} {
    %c0 = arith.constant 0 : index
    %c0_0 = arith.constant 0 : index
    %0 = vector.load %arg1[%c0, %c0_0] : memref<16x128xf32, #tpu.memory_space<vmem>>, vector<16x128xf32>
    %1 = arith.truncf %0 : vector<16x128xf32> to vector<16x128xbf16>
    %c0_1 = arith.constant 0 : index
    %c0_2 = arith.constant 0 : index
    %2 = vector.load %arg2[%c0_1, %c0_2] : memref<128x256xbf16, #tpu.memory_space<vmem>>, vector<128x256xbf16>
    %cst = arith.constant dense<0.000000e+00> : vector<16x256xf32>
    %3 = tpu.matmul %1, %2, %cst {dimension_numbers = #tpu.dot_dimension_numbers<[1], [0], [0], [1], [0, 0, 1, 1], [], []>} : vector<16x128xbf16>, vector<128x256xbf16>, vector<16x256xf32> -> vector<16x256xf32>
    %c0_3 = arith.constant 0 : index
    %c0_4 = arith.constant 0 : index
    %4 = vector.load %arg3[%c0_3, %c0_4] : memref<1x256xf32, #tpu.memory_space<vmem>>, vector<1x256xf32>
    %5 = vector.broadcast %4 : vector<1x256xf32> to vector<16x256xf32>
    %6 = arith.addf %3, %5 : vector<16x256xf32>
    %cst_5 = arith.constant 5.000000e-01 : f32
    %7 = vector.broadcast %cst_5 : f32 to vector<16x256xf32>
    %8 = arith.mulf %7, %6 : vector<16x256xf32>
    %cst_6 = arith.constant 4.471500e-02 : f32
    %9 = vector.broadcast %cst_6 : f32 to vector<16x256xf32>
    %10 = arith.mulf %9, %6 : vector<16x256xf32>
    %11 = arith.mulf %10, %6 : vector<16x256xf32>
    %12 = arith.mulf %11, %6 : vector<16x256xf32>
    %13 = arith.addf %6, %12 : vector<16x256xf32>
    %cst_7 = arith.constant 0.797884583 : f32
    %14 = vector.broadcast %cst_7 : f32 to vector<16x256xf32>
    %15 = arith.mulf %14, %13 : vector<16x256xf32>
    %16 = math.tanh %15 : vector<16x256xf32>
    %cst_8 = arith.constant 1.000000e+00 : f32
    %17 = vector.broadcast %cst_8 : f32 to vector<16x256xf32>
    %18 = arith.addf %17, %16 : vector<16x256xf32>
    %19 = arith.mulf %8, %18 : vector<16x256xf32>
    %20 = arith.truncf %19 : vector<16x256xf32> to vector<16x256xbf16>
    %c0_9 = arith.constant 0 : index
    %c0_10 = arith.constant 0 : index
    %21 = vector.load %arg4[%c0_9, %c0_10] : memref<256x128xbf16, #tpu.memory_space<vmem>>, vector<256x128xbf16>
    %cst_11 = arith.constant dense<0.000000e+00> : vector<16x128xf32>
    %22 = tpu.matmul %20, %21, %cst_11 {dimension_numbers = #tpu.dot_dimension_numbers<[1], [0], [0], [1], [0, 0, 1, 1], [], []>} : vector<16x256xbf16>, vector<256x128xbf16>, vector<16x128xf32> -> vector<16x128xf32>
    %c0_12 = arith.constant 0 : index
    %c0_13 = arith.constant 0 : index
    %23 = vector.load %arg5[%c0_12, %c0_13] : memref<1x128xf32, #tpu.memory_space<vmem>>, vector<1x128xf32>
    %24 = vector.broadcast %23 : vector<1x128xf32> to vector<16x128xf32>
    %25 = arith.addf %22, %24 : vector<16x128xf32>
    %c0_14 = arith.constant 0 : index
    %c0_15 = arith.constant 0 : index
    %26 = vector.load %arg6[%c0_14, %c0_15] : memref<16x128xf32, #tpu.memory_space<vmem>>, vector<16x128xf32>
    tpu.vector_store %arg6[%c0_14, %c0_15], %25 {strides = array<i32>} : memref<16x128xf32, #tpu.memory_space<vmem>>, vector<16x128xf32>,
    return
  }
  func.func @transform_0(%arg0: i32) -> (i32, i32) {
    %c0_i32 = arith.constant 0 : i32
    %c0_i32_0 = arith.constant 0 : i32
    return %arg0, %c0_i32 : i32, i32
  }
  func.func @transform_1(%arg0: i32) -> (i32, i32) {
    %c0_i32 = arith.constant 0 : i32
    %c0_i32_0 = arith.constant 0 : i32
    %c0_i32_1 = arith.constant 0 : i32
    return %c0_i32, %c0_i32_0 : i32, i32
  }
  func.func @transform_2(%arg0: i32) -> (i32, i32) {
    %c0_i32 = arith.constant 0 : i32
    %c0_i32_0 = arith.constant 0 : i32
    %c0_i32_1 = arith.constant 0 : i32
    return %c0_i32, %c0_i32_0 : i32, i32
  }
  func.func @transform_3(%arg0: i32) -> (i32, i32) {
    %c0_i32 = arith.constant 0 : i32
    %c0_i32_0 = arith.constant 0 : i32
    %c0_i32_1 = arith.constant 0 : i32
    return %c0_i32, %c0_i32_0 : i32, i32
  }
  func.func @transform_4(%arg0: i32) -> (i32, i32) {
    %c0_i32 = arith.constant 0 : i32
    %c0_i32_0 = arith.constant 0 : i32
    %c0_i32_1 = arith.constant 0 : i32
    return %c0_i32, %c0_i32_0 : i32, i32
  }
  func.func @transform_5(%arg0: i32) -> (i32, i32) {
    %c0_i32 = arith.constant 0 : i32
    %c0_i32_0 = arith.constant 0 : i32
    return %arg0, %c0_i32 : i32, i32
  }
}

</mosaic_0001>

<llo_original>
// kernel: tpu_custom_call.1
$region0: #{tpu_custom_call.1}
  #allocation0 [shape = 'u32[]', space=smem, size = 0x4, offset = 0x4, fixed_abs, tag = 'smem constant byte address 0x4 - core index']
  #allocation1 [shape = 'u32[72,128]{1,0:T(1,128)}', space=vmem, size = 0x9000, scoped, tag = 'internal scratch']
  %s0 = inlined_call_operand.hbm [shape: f32[16,128], index: 0, kind: input, shape index: {}]
  %s1 = inlined_call_operand.hbm [shape: bf16[128,256], index: 1, kind: input, shape index: {}]
  %s2 = inlined_call_operand.hbm [shape: f32[1,256], index: 2, kind: input, shape index: {}]
  %s3 = inlined_call_operand.hbm [shape: bf16[256,128], index: 3, kind: input, shape index: {}]
  %s4 = inlined_call_operand.vmem [shape: f32[1,128], index: 4, kind: input, shape index: {}]
  %s5 = inlined_call_operand.hbm [shape: f32[16,128], index: 5, kind: output, shape index: {}]
  %s6 = sld [smem:[#allocation0]]
  $region46: #{tpu_custom_call.1} parent=0
    _
  %s8 = ssub.s32 1, %s6
  %s9 = scalar_select 0, %s8, %s6
  $region1: #{tpu_custom_call.1} parent=0
    #allocation2 [shape = 'u8[8192]{0}', space=vmem, size = 0x2000, scoped, tag = 'input window, operand 0, single buffered']
    #allocation3 [shape = 's32[1]{0}', space=sflag, size = 0x4, scoped, tag = 'scoped memory for tpu_custom_call.1']
    #allocation4 [shape = 's32[1]{0}', space=sflag, size = 0x4, scoped, tag = 'scoped memory for tpu_custom_call.1']
    #allocation5 [shape = 'u8[65536]{0}', space=vmem, size = 0x10000, scoped, tag = 'input window, operand 1, single buffered']
    #allocation6 [shape = 's32[1]{0}', space=sflag, size = 0x4, scoped, tag = 'scoped memory for tpu_custom_call.1']
    #allocation7 [shape = 'u8[1024]{0}', space=vmem, size = 0x400, scoped, tag = 'input window, operand 2, single buffered']
    #allocation8 [shape = 'u8[65536]{0}', space=vmem, size = 0x10000, scoped, tag = 'input window, operand 3, single buffered']
    #allocation9 [shape = 's32[1]{0}', space=sflag, size = 0x4, scoped, tag = 'scoped memory for tpu_custom_call.1']
    #allocation10 [shape = 'u8[8192]{0}', space=vmem, size = 0x2000, scoped, tag = 'output window, operand 0, single buffered']
    %10 = vsyncpa [#allocation3], 0
    %11 = vsyncpa [#allocation6], 0
    %12 = vsyncpa [#allocation9], 0
    %13 = vsyncpa [#allocation4], 0
    // Predicated region
    $region2: #{tpu_custom_call.1} parent=1 // pred_check
      _
    $region3: #{tpu_custom_call.1} parent=1 // pred_check_branch
      %15 = sbr.rel (0) target = $region5
    $region4: #{tpu_custom_call.1} parent=1 // pred_region
      %17 = vsyncadd [#allocation3], 0
      %s18 = sshll.u32 %s0, 4
      %s19 = int_to_ptr.hbm [resolvable:$true] %s18
      %s20 = sshll.u32 [#allocation2], 4
      %s21 = int_to_ptr.vmem [resolvable:$true] %s20
      %26 = dma.hbm_to_vmem [thread:$0]  %s19, 256, %s21, [#allocation3], 128, 128, 8
    $region5: #{tpu_custom_call.1} parent=1 // pred_fallthru
      _
    // Predicated region
    $region6: #{tpu_custom_call.1} parent=1 // pred_check
      _
    $region7: #{tpu_custom_call.1} parent=1 // pred_check_branch
      %28 = sbr.rel (0) target = $region9
    $region8: #{tpu_custom_call.1} parent=1 // pred_region
      %30 = vsyncadd [#allocation6], 0
      %s31 = sshll.u32 %s1, 4
      %s32 = int_to_ptr.hbm [resolvable:$true] %s31
      %s33 = sshll.u32 [#allocation5], 4
      %s34 = int_to_ptr.vmem [resolvable:$true] %s33
      %39 = dma.hbm_to_vmem [thread:$0]  %s32, 2048, %s34, [#allocation6], 128, 128, 8
    $region9: #{tpu_custom_call.1} parent=1 // pred_fallthru
      _
    // Predicated region
    $region10: #{tpu_custom_call.1} parent=1 // pred_check
      _
    $region11: #{tpu_custom_call.1} parent=1 // pred_check_branch
      %41 = sbr.rel (0) target = $region13
    $region12: #{tpu_custom_call.1} parent=1 // pred_region
      %43 = vsyncadd [#allocation6], 0
      %s45 = sshll.u32 %s2, 4
      %s46 = int_to_ptr.hbm [resolvable:$true] %s45
      %s47 = sshll.u32 [#allocation7], 4
      %s48 = int_to_ptr.vmem [resolvable:$true] %s47
      %50 = dma.hbm_to_vmem [thread:$0]  %s46, 32, %s48, [#allocation6]
    $region13: #{tpu_custom_call.1} parent=1 // pred_fallthru
      _
    // Predicated region
    $region14: #{tpu_custom_call.1} parent=1 // pred_check
      _
    $region15: #{tpu_custom_call.1} parent=1 // pred_check_branch
      %52 = sbr.rel (0) target = $region17
    $region16: #{tpu_custom_call.1} parent=1 // pred_region
      %54 = vsyncadd [#allocation9], 0
      %s55 = sshll.u32 %s3, 4
      %s56 = int_to_ptr.hbm [resolvable:$true] %s55
      %s57 = sshll.u32 [#allocation8], 4
      %s58 = int_to_ptr.vmem [resolvable:$true] %s57
      %63 = dma.hbm_to_vmem [thread:$0]  %s56, 2048, %s58, [#allocation9], 64, 64, 4
    $region17: #{tpu_custom_call.1} parent=1 // pred_fallthru
      _
    // Predicated region
    $region18: #{tpu_custom_call.1} parent=1 // pred_check
      _
    $region19: #{tpu_custom_call.1} parent=1 // pred_check_branch
      %65 = sbr.rel (0) target = $region21
    $region20: #{tpu_custom_call.1} parent=1 // pred_region
      _
    $region21: #{tpu_custom_call.1} parent=1 // pred_fallthru
      _
    // Predicated region
    $region22: #{tpu_custom_call.1} parent=1 // pred_check
      _
    $region23: #{tpu_custom_call.1} parent=1 // pred_check_branch
      %67 = sbr.rel (0) target = $region25
    $region24: #{tpu_custom_call.1} parent=1 // pred_region
      %69 = dma.done [#allocation3], 256
    $region25: #{tpu_custom_call.1} parent=1 // pred_fallthru
      _
    // Predicated region
    $region26: #{tpu_custom_call.1} parent=1 // pred_check
      _
    $region27: #{tpu_custom_call.1} parent=1 // pred_check_branch
      %71 = sbr.rel (0) target = $region29
    $region28: #{tpu_custom_call.1} parent=1 // pred_region
      %73 = dma.done [#allocation6], 2048
    $region29: #{tpu_custom_call.1} parent=1 // pred_fallthru
      _
    // Predicated region
    $region30: #{tpu_custom_call.1} parent=1 // pred_check
      _
    $region31: #{tpu_custom_call.1} parent=1 // pred_check_branch
      %75 = sbr.rel (0) target = $region33
    $region32: #{tpu_custom_call.1} parent=1 // pred_region
      %77 = dma.done [#allocation6], 32
    $region33: #{tpu_custom_call.1} parent=1 // pred_fallthru
      _
    // Predicated region
    $region34: #{tpu_custom_call.1} parent=1 // pred_check
      _
    $region35: #{tpu_custom_call.1} parent=1 // pred_check_branch
      %79 = sbr.rel (0) target = $region37
    $region36: #{tpu_custom_call.1} parent=1 // pred_region
      %81 = dma.done [#allocation9], 2048
    $region37: #{tpu_custom_call.1} parent=1 // pred_fallthru
      _
    %v82 = vld [vmem:[#allocation2] sm:$0xff]
    %v83 = vld [vmem:[#allocation2 + $0x8] sm:$0xff]
    %v84 = vpack.c.bf16 %v83, %v82
    %v85 = vld [vmem:[#allocation5] sm:$0xff]
    %v86 = vld [vmem:[#allocation5 + $0x8] sm:$0xff]
    %v87 = vld [vmem:[#allocation5 + $0x10] sm:$0xff]
    %v88 = vld [vmem:[#allocation5 + $0x18] sm:$0xff]
    %v89 = vld [vmem:[#allocation5 + $0x20] sm:$0xff]
    %v90 = vld [vmem:[#allocation5 + $0x28] sm:$0xff]
    %v91 = vld [vmem:[#allocation5 + $0x30] sm:$0xff]
    %v92 = vld [vmem:[#allocation5 + $0x38] sm:$0xff]
    %v93 = vld [vmem:[#allocation5 + $0x40] sm:$0xff]
    %v94 = vld [vmem:[#allocation5 + $0x48] sm:$0xff]
    %v95 = vld [vmem:[#allocation5 + $0x50] sm:$0xff]
    %v96 = vld [vmem:[#allocation5 + $0x58] sm:$0xff]
    %v97 = vld [vmem:[#allocation5 + $0x60] sm:$0xff]
    %v98 = vld [vmem:[#allocation5 + $0x68] sm:$0xff]
    %v99 = vld [vmem:[#allocation5 + $0x70] sm:$0xff]
    %v100 = vld [vmem:[#allocation5 + $0x78] sm:$0xff]
    %v101 = vld [vmem:[#allocation7] sm:$0x3]
    %v103 = vperm.slane %v101, 0
    %v104 = vperm.slane %v101, 1
    %v123 = vunpack.c.l.b16 %v85
    %v124 = vunpack.c.h.b16 %v85
    %v125 = vunpack.c.l.b16 %v86
    %v126 = vunpack.c.h.b16 %v86
    %v127 = vunpack.c.l.b16 %v87
    %v128 = vunpack.c.h.b16 %v87
    %v129 = vunpack.c.l.b16 %v88
    %v130 = vunpack.c.h.b16 %v88
    %v131 = vunpack.c.l.b16 %v89
    %v132 = vunpack.c.h.b16 %v89
    %v133 = vunpack.c.l.b16 %v90
    %v134 = vunpack.c.h.b16 %v90
    %v135 = vunpack.c.l.b16 %v91
    %v136 = vunpack.c.h.b16 %v91
    %v137 = vunpack.c.l.b16 %v92
    %v138 = vunpack.c.h.b16 %v92
    %v139 = vunpack.c.l.b16 %v93
    %v140 = vunpack.c.h.b16 %v93
    %v141 = vunpack.c.l.b16 %v94
    %v142 = vunpack.c.h.b16 %v94
    %v143 = vunpack.c.l.b16 %v95
    %v144 = vunpack.c.h.b16 %v95
    %v145 = vunpack.c.l.b16 %v96
    %v146 = vunpack.c.h.b16 %v96
    %v147 = vunpack.c.l.b16 %v97
    %v148 = vunpack.c.h.b16 %v97
    %v149 = vunpack.c.l.b16 %v98
    %v150 = vunpack.c.h.b16 %v98
    %v151 = vunpack.c.l.b16 %v99
    %v152 = vunpack.c.h.b16 %v99
    %v153 = vunpack.c.l.b16 %v100
    %v154 = vunpack.c.h.b16 %v100
    %v155 = vpack.c.b16 %v125, %v123
    %v156 = vpack.c.b16 %v126, %v124
    %v157 = vpack.c.b16 %v129, %v127
    %v158 = vpack.c.b16 %v130, %v128
    %v159 = vpack.c.b16 %v133, %v131
    %v160 = vpack.c.b16 %v134, %v132
    %v161 = vpack.c.b16 %v137, %v135
    %v162 = vpack.c.b16 %v138, %v136
    %v163 = vpack.c.b16 %v141, %v139
    %v164 = vpack.c.b16 %v142, %v140
    %v165 = vpack.c.b16 %v145, %v143
    %v166 = vpack.c.b16 %v146, %v144
    %v167 = vpack.c.b16 %v149, %v147
    %v168 = vpack.c.b16 %v150, %v148
    %v169 = vpack.c.b16 %v153, %v151
    %v170 = vpack.c.b16 %v154, %v152
    %187 = vmatpush.bf16.msra.mxu0 %v169
    %188 = vmatpush.bf16.msra.mxu0 %v167
    %189 = vmatpush.bf16.msra.mxu0 %v165
    %190 = vmatpush.bf16.msra.mxu0 %v163
    %191 = vmatpush.bf16.msra.mxu0 %v161
    %192 = vmatpush.bf16.msra.mxu0 %v159
    %193 = vmatpush.bf16.msra.mxu0 %v157
    %194 = vmatpush.bf16.msra.mxu0 %v155
    %195 = vmatmul.bf16.gmra.mxu0 %v84
    %v196 = vpop.f32.mrf.mxu0
    %v197 = vadd.f32 %v103, %v196
    %v198 = vpop.f32.mrf.mxu0
    %v199 = vadd.f32 %v103, %v198
    %200 = vdwg.mxu0
    %201 = vmatpush.bf16.msra.mxu0 %v170
    %202 = vmatpush.bf16.msra.mxu0 %v168
    %203 = vmatpush.bf16.msra.mxu0 %v166
    %204 = vmatpush.bf16.msra.mxu0 %v164
    %205 = vmatpush.bf16.msra.mxu0 %v162
    %206 = vmatpush.bf16.msra.mxu0 %v160
    %207 = vmatpush.bf16.msra.mxu0 %v158
    %208 = vmatpush.bf16.msra.mxu0 %v156
    %209 = vmatmul.bf16.gmra.mxu0 %v84
    %v210 = vpop.f32.mrf.mxu0
    %v211 = vadd.f32 %v104, %v210
    %v212 = vpop.f32.mrf.mxu0
    %v213 = vadd.f32 %v104, %v212
    %214 = vdwg.mxu0
    %v215 = vmul.f32 %v197, 0.5
    %v216 = vmul.f32 %v211, 0.5
    %v217 = vmul.f32 %v199, 0.5
    %v218 = vmul.f32 %v213, 0.5
    %v219 = vmul.f32 %v197, 0.044715
    %v220 = vmul.f32 %v211, 0.044715
    %v221 = vmul.f32 %v199, 0.044715
    %v222 = vmul.f32 %v213, 0.044715
    %v223 = vmul.f32 %v219, %v197
    %v224 = vmul.f32 %v220, %v211
    %v225 = vmul.f32 %v221, %v199
    %v226 = vmul.f32 %v222, %v213
    %v227 = vmul.f32 %v223, %v197
    %v228 = vmul.f32 %v224, %v211
    %v229 = vmul.f32 %v225, %v199
    %v230 = vmul.f32 %v226, %v213
    %v231 = vadd.f32 %v197, %v227
    %v232 = vadd.f32 %v211, %v228
    %v233 = vadd.f32 %v199, %v229
    %v234 = vadd.f32 %v213, %v230
    %v235 = vmul.f32 %v231, 0.7978846
    %v236 = vmul.f32 %v232, 0.7978846
    %v237 = vmul.f32 %v233, 0.7978846
    %v238 = vmul.f32 %v234, 0.7978846
    %v239 = vtanh.pop %v235
    %v240 = vtanh.pop %v236
    %v241 = vtanh.pop %v237
    %v242 = vtanh.pop %v238
    %v243 = vadd.f32 %v239, 1.0
    %v244 = vadd.f32 %v240, 1.0
    %v245 = vadd.f32 %v241, 1.0
    %v246 = vadd.f32 %v242, 1.0
    %v247 = vmul.f32 %v215, %v243
    %v248 = vmul.f32 %v216, %v244
    %v249 = vmul.f32 %v217, %v245
    %v250 = vmul.f32 %v218, %v246
    %v251 = vpack.c.bf16 %v249, %v247
    %v252 = vpack.c.bf16 %v250, %v248
    %v253 = vld [vmem:[#allocation8] sm:$0xf]
    %v254 = vld [vmem:[#allocation8 + $0x4] sm:$0xf]
    %v255 = vld [vmem:[#allocation8 + $0x8] sm:$0xf]
    %v256 = vld [vmem:[#allocation8 + $0xc] sm:$0xf]
    %v257 = vld [vmem:[#allocation8 + $0x10] sm:$0xf]
    %v258 = vld [vmem:[#allocation8 + $0x14] sm:$0xf]
    %v259 = vld [vmem:[#allocation8 + $0x18] sm:$0xf]
    %v260 = vld [vmem:[#allocation8 + $0x1c] sm:$0xf]
    %v261 = vld [vmem:[#allocation8 + $0x20] sm:$0xf]
    %v262 = vld [vmem:[#allocation8 + $0x24] sm:$0xf]
    %v263 = vld [vmem:[#allocation8 + $0x28] sm:$0xf]
    %v264 = vld [vmem:[#allocation8 + $0x2c] sm:$0xf]
    %v265 = vld [vmem:[#allocation8 + $0x30] sm:$0xf]
    %v266 = vld [vmem:[#allocation8 + $0x34] sm:$0xf]
    %v267 = vld [vmem:[#allocation8 + $0x38] sm:$0xf]
    %v268 = vld [vmem:[#allocation8 + $0x3c] sm:$0xf]
    %v269 = vld [vmem:[#allocation8 + $0x40] sm:$0xf]
    %v270 = vld [vmem:[#allocation8 + $0x44] sm:$0xf]
    %v271 = vld [vmem:[#allocation8 + $0x48] sm:$0xf]
    %v272 = vld [vmem:[#allocation8 + $0x4c] sm:$0xf]
    %v273 = vld [vmem:[#allocation8 + $0x50] sm:$0xf]
    %v274 = vld [vmem:[#allocation8 + $0x54] sm:$0xf]
    %v275 = vld [vmem:[#allocation8 + $0x58] sm:$0xf]
    %v276 = vld [vmem:[#allocation8 + $0x5c] sm:$0xf]
    %v277 = vld [vmem:[#allocation8 + $0x60] sm:$0xf]
    %v278 = vld [vmem:[#allocation8 + $0x64] sm:$0xf]
    %v279 = vld [vmem:[#allocation8 + $0x68] sm:$0xf]
    %v280 = vld [vmem:[#allocation8 + $0x6c] sm:$0xf]
    %v281 = vld [vmem:[#allocation8 + $0x70] sm:$0xf]
    %v282 = vld [vmem:[#allocation8 + $0x74] sm:$0xf]
    %v283 = vld [vmem:[#allocation8 + $0x78] sm:$0xf]
    %v284 = vld [vmem:[#allocation8 + $0x7c] sm:$0xf]
    %v285 = vld [vmem:[%s4] sm:$0x1]
    %v287 = vperm.slane %v285, 0
    %v321 = vunpack.c.l.b16 %v253
    %v322 = vunpack.c.l.b16 %v254
    %v323 = vunpack.c.l.b16 %v255
    %v324 = vunpack.c.l.b16 %v256
    %v325 = vunpack.c.l.b16 %v257
    %v326 = vunpack.c.l.b16 %v258
    %v327 = vunpack.c.l.b16 %v259
    %v328 = vunpack.c.l.b16 %v260
    %v329 = vunpack.c.l.b16 %v261
    %v330 = vunpack.c.l.b16 %v262
    %v331 = vunpack.c.l.b16 %v263
    %v332 = vunpack.c.l.b16 %v264
    %v333 = vunpack.c.l.b16 %v265
    %v334 = vunpack.c.l.b16 %v266
    %v335 = vunpack.c.l.b16 %v267
    %v336 = vunpack.c.l.b16 %v268
    %v337 = vunpack.c.l.b16 %v269
    %v338 = vunpack.c.l.b16 %v270
    %v339 = vunpack.c.l.b16 %v271
    %v340 = vunpack.c.l.b16 %v272
    %v341 = vunpack.c.l.b16 %v273
    %v342 = vunpack.c.l.b16 %v274
    %v343 = vunpack.c.l.b16 %v275
    %v344 = vunpack.c.l.b16 %v276
    %v345 = vunpack.c.l.b16 %v277
    %v346 = vunpack.c.l.b16 %v278
    %v347 = vunpack.c.l.b16 %v279
    %v348 = vunpack.c.l.b16 %v280
    %v349 = vunpack.c.l.b16 %v281
    %v350 = vunpack.c.l.b16 %v282
    %v351 = vunpack.c.l.b16 %v283
    %v352 = vunpack.c.l.b16 %v284
    %v353 = vpack.c.b16 %v322, %v321
    %v354 = vpack.c.b16 %v324, %v323
    %v355 = vpack.c.b16 %v326, %v325
    %v356 = vpack.c.b16 %v328, %v327
    %v357 = vpack.c.b16 %v330, %v329
    %v358 = vpack.c.b16 %v332, %v331
    %v359 = vpack.c.b16 %v334, %v333
    %v360 = vpack.c.b16 %v336, %v335
    %v361 = vpack.c.b16 %v338, %v337
    %v362 = vpack.c.b16 %v340, %v339
    %v363 = vpack.c.b16 %v342, %v341
    %v364 = vpack.c.b16 %v344, %v343
    %v365 = vpack.c.b16 %v346, %v345
    %v366 = vpack.c.b16 %v348, %v347
    %v367 = vpack.c.b16 %v350, %v349
    %v368 = vpack.c.b16 %v352, %v351
    %385 = vmatpush.bf16.msra.mxu0 %v360
    %386 = vmatpush.bf16.msra.mxu0 %v359
    %387 = vmatpush.bf16.msra.mxu0 %v358
    %388 = vmatpush.bf16.msra.mxu0 %v357
    %389 = vmatpush.bf16.msra.mxu0 %v356
    %390 = vmatpush.bf16.msra.mxu0 %v355
    %391 = vmatpush.bf16.msra.mxu0 %v354
    %392 = vmatpush.bf16.msra.mxu0 %v353
    %393 = vmatmul.bf16.gmra.mxu0 %v251
    %v394 = vpop.f32.mrf.mxu0
    %v395 = vadd.f32 %v287, %v394
    %v396 = vpop.f32.mrf.mxu0
    %v397 = vadd.f32 %v287, %v396
    %398 = vdwg.mxu0
    %399 = vmatpush.bf16.msra.mxu0 %v368
    %400 = vmatpush.bf16.msra.mxu0 %v367
    %401 = vmatpush.bf16.msra.mxu0 %v366
    %402 = vmatpush.bf16.msra.mxu0 %v365
    %403 = vmatpush.bf16.msra.mxu0 %v364
    %404 = vmatpush.bf16.msra.mxu0 %v363
    %405 = vmatpush.bf16.msra.mxu0 %v362
    %406 = vmatpush.bf16.msra.mxu0 %v361
    %407 = vmatmul.bf16.gmra.mxu0 %v252
    %v408 = vpop.f32.mrf.mxu0
    %v409 = vadd.f32 %v395, %v408
    %v410 = vpop.f32.mrf.mxu0
    %v411 = vadd.f32 %v397, %v410
    %412 = vdwg.mxu0
    %413 = vst [vmem:[#allocation10] sm:$0xff] %v409
    %414 = vst [vmem:[#allocation10 + $0x8] sm:$0xff] %v411
    // Predicated region
    $region38: #{tpu_custom_call.1} parent=1 // pred_check
      _
    $region39: #{tpu_custom_call.1} parent=1 // pred_check_branch
      %416 = sbr.rel (0) target = $region41
    $region40: #{tpu_custom_call.1} parent=1 // pred_region
      %418 = vsyncadd [#allocation4], 0
      %s419 = sshll.u32 [#allocation10], 4
      %s420 = int_to_ptr.vmem [resolvable:$true] %s419
      %s421 = sshll.u32 %s5, 4
      %s422 = int_to_ptr.hbm [resolvable:$true] %s421
      %427 = dma.vmem_to_hbm [thread:$0]  %s420, 256, %s422, [#allocation4], 128, 128, 8
    $region41: #{tpu_custom_call.1} parent=1 // pred_fallthru
      _
    // Predicated region
    $region42: #{tpu_custom_call.1} parent=1 // pred_check
      _
    $region43: #{tpu_custom_call.1} parent=1 // pred_check_branch
      %429 = sbr.rel (0) target = $region45
    $region44: #{tpu_custom_call.1} parent=1 // pred_region
      %431 = dma.done [#allocation4], 256
    $region45: #{tpu_custom_call.1} parent=1 // pred_fallthru
      _
    %432 = vsyncpa [#allocation3], 1
    %433 = vsyncpa [#allocation6], 1
    %434 = vsyncpa [#allocation9], 1
    %435 = vsyncpa [#allocation4], 1

</llo_original>
